<compile_context>
chip_gen: v6e
topology: v6e:2x2x1
jax: 0.10.0
libtpu: 0.0.40
codegen_flags: <defaults>
</compile_context>

<pallas_src>
import functools

import jax
import jax.numpy as jnp
from jax.experimental import pallas as pl
from jax.experimental.pallas import tpu as pltpu


def _round_up(a, b):
    return ((a + b - 1) // b) * b


def _row_sum_kernel(x_ref, o_ref, *, n_rows, block_rows, needs_mask):
    s = pl.program_id(0)        # row-split axis ("parallel", v7x dual-TC)
    t = pl.program_id(1)        # reduction axis ("arbitrary")

    @pl.when(t == 0)
    def _():
        o_ref[...] = jnp.zeros_like(o_ref)

    x = x_ref[...].astype(jnp.float32)                    # (block_rows, d)

    if needs_mask:
        # Mask rows past the true row count (handles the ragged last tile
        # without any host-side padding).
        base = (s * pl.num_programs(1) + t) * block_rows
        row = jax.lax.broadcasted_iota(jnp.int32, (block_rows, 1), 0)
        x = jnp.where(base + row < n_rows, x, 0.0)

    # Fold the tile into groups of 8 sublanes and accumulate: pure VPU adds in
    # the hot loop; the final 8-sublane (XLU) reduce happens once, outside.
    d = x.shape[-1]
    partial = jnp.sum(x.reshape(block_rows // 8, 8, d), axis=0)   # (8, d)
    o_ref[...] += partial[None, :, :]


def _readout_sum(embeddings):
    """Sum an (N, D) array over axis 0 with a Pallas kernel; returns (D,) f32."""
    n, d = embeddings.shape
    itemsize = jnp.dtype(embeddings.dtype).itemsize

    # --- lane-dense folding for narrow hidden sizes (D < 128) ---------------
    k = 1
    if d < 128:
        kk = 128 // d
        if kk >= 2 and n >= kk:
            k = kk
    n_main = (n // k) * k
    if k > 1:
        x_main = embeddings[:n_main].reshape(n_main // k, k * d)  # free reshape
    else:
        x_main = embeddings
    n2, d2 = x_main.shape

    # --- row tile sized against ~8 MiB of double-buffered input VMEM --------
    row_mult = max(8, 32 // itemsize)      # f32 -> 8, bf16 -> 16, int8 -> 32
    budget = 8 * 1024 * 1024
    tm = budget // (2 * d2 * itemsize)
    tm = max(row_mult, min(2048, (tm // row_mult) * row_mult))
    tm = min(tm, _round_up(n2, row_mult))

    n_blocks = pl.cdiv(n2, tm)
    # Prefer an even tile count so the 2-way core split divides cleanly
    # (avoids fully out-of-bounds phantom blocks).
    if n_blocks > 1 and n_blocks % 2 == 1:
        tm_alt = _round_up(pl.cdiv(n2, n_blocks + 1), row_mult)
        if pl.cdiv(n2, tm_alt) % 2 == 0:
            tm = tm_alt
            n_blocks = pl.cdiv(n2, tm)
    n_split = 2 if (n_blocks >= 2 and n_blocks % 2 == 0) else 1
    tiles_per_split = n_blocks // n_split
    needs_mask = (n_blocks * tm) != n2

    kernel = functools.partial(
        _row_sum_kernel, n_rows=n2, block_rows=tm, needs_mask=needs_mask)

    cost = pl.CostEstimate(
        flops=n2 * d2,
        transcendentals=0,
        bytes_accessed=n2 * d2 * itemsize + n_split * 8 * d2 * 4,
    )

    partials = pl.pallas_call(
        kernel,
        out_shape=jax.ShapeDtypeStruct((n_split, 8, d2), jnp.float32),
        grid_spec=pltpu.PrefetchScalarGridSpec(
            num_scalar_prefetch=0,
            grid=(n_split, tiles_per_split),
            in_specs=[pl.BlockSpec(
                (tm, d2), lambda s, t: (s * tiles_per_split + t, 0))],
            out_specs=pl.BlockSpec((1, 8, d2), lambda s, t: (s, 0, 0)),
        ),
        compiler_params=pltpu.CompilerParams(
            dimension_semantics=("parallel", "arbitrary")),
        cost_estimate=cost,
    )(x_main)

    total = jnp.sum(partials, axis=(0, 1))                # (d2,) tiny epilogue
    if k > 1:
        total = jnp.sum(total.reshape(k, d), axis=0)      # undo lane fold
    if n_main < n:
        # < k leftover rows that did not fit the lane fold -- negligible.
        total = total + jnp.sum(embeddings[n_main:].astype(jnp.float32), axis=0)
    return total


def _readout_reduce(embeddings, *, mode):
    n = embeddings.shape[0]
    total = _readout_sum(embeddings)
    if mode == "mean":
        total = total / n
    return total.astype(embeddings.dtype)


class BaseReadOut:
    """JAX/Pallas port of opengcl BaseReadOut (mean / sum / jk-net readouts)."""

    def __init__(self, name, enc_dims, **kwargs):
        name = name.lower()
        assert name in ("mean", "sum", "jk-net")
        self.name = name
        self.enc_dims = enc_dims
        for key, val in kwargs.items():
            setattr(self, key, val)
        # JKNetReadOut owns a Linear(sum(enc_dims), enc_dims[-1]) used only by
        # .lintrans() (not by forward); initialize it deterministically.
        if name == "jk-net":
            in_f, out_f = sum(enc_dims), enc_dims[-1]
            kw, kb = jax.random.split(jax.random.PRNGKey(42))
            bound = 1.0 / (in_f ** 0.5)
            self.linear_w = jax.random.uniform(
                kw, (out_f, in_f), jnp.float32, -bound, bound)
            self.linear_b = jax.random.uniform(
                kb, (out_f,), jnp.float32, -bound, bound)

    def __call__(self, embeddings):
        mode = "mean" if self.name == "mean" else "sum"
        return _readout_reduce(embeddings, mode=mode)

    def lintrans(self, x):
        # Glue path, not the forward hot path -- plain JAX.
        # TODO(synk): could be fused into a Pallas matmul if it ever becomes hot.
        return x @ self.linear_w.T + self.linear_b


if __name__ == "__main__":
    key = jax.random.PRNGKey(0)
    ok = True
    # (num_nodes, hidden): a narrow lane-folded case and a ragged multi-tile
    # case that exercises the in-kernel tail mask and the 2-way row split.
    for (N, D) in ((64, 32), (4100, 256)):
        kx, key = jax.random.split(key)
        embeddings = jax.random.normal(kx, (N, D), dtype=jnp.float32)
        for name, ref_fn in (("mean", lambda x: jnp.mean(x, axis=0)),
                             ("sum", lambda x: jnp.sum(x, axis=0)),
                             ("jk-net", lambda x: jnp.sum(x, axis=0))):
            mod = BaseReadOut(name, enc_dims=[16, 16])
            out = jax.block_until_ready(mod(embeddings))
            ref = ref_fn(embeddings)
            ok &= bool(jnp.allclose(out, ref, atol=2e-3, rtol=2e-3))
            ok &= out.shape == (D,)

    print("KERNEL_OK" if ok else "KERNEL_MISMATCH")
</pallas_src>

<mosaic_0001>
module attributes {stable_mosaic.version = 11 : i64} {
  func.func @_row_sum_kernel(%arg0: i32, %arg1: i32, %arg2: memref<16x128xf32, #tpu.memory_space<vmem>>, %arg3: memref<1x8x128xf32, #tpu.memory_space<vmem>>) attributes {dimension_semantics = [#tpu.dimension_semantics<parallel>, #tpu.dimension_semantics<arbitrary>], iteration_bounds = array<i64: 1, 1>, scalar_prefetch = 0 : i64, scratch_operands = 0 : i64, tpu.core_type = #tpu.core_type<tc>, window_params = [{transform_indices = @transform_0, window_bounds = array<i64: 16, 128>}, {transform_indices = @transform_1, window_bounds = array<i64: 1, 8, 128>}]} {
    %c0_i32 = arith.constant 0 : i32
    %0 = arith.cmpi eq, %arg1, %c0_i32 : i32
    %1 = arith.extui %0 : i1 to i32
    %c0_i32_0 = arith.constant 0 : i32
    %2 = arith.cmpi ne, %1, %c0_i32_0 : i32
    scf.if %2 {
      %cst_8 = arith.constant 0.000000e+00 : f32
      %10 = vector.broadcast %cst_8 : f32 to vector<1x8x128xf32>
      %c0_9 = arith.constant 0 : index
      %c0_10 = arith.constant 0 : index
      %c0_11 = arith.constant 0 : index
      %11 = vector.load %arg3[%c0_9, %c0_10, %c0_11] : memref<1x8x128xf32, #tpu.memory_space<vmem>>, vector<1x8x128xf32>
      tpu.vector_store %arg3[%c0_9, %c0_10, %c0_11], %10 {strides = array<i32>} : memref<1x8x128xf32, #tpu.memory_space<vmem>>, vector<1x8x128xf32>,
    } else {
    }
    %c0 = arith.constant 0 : index
    %c0_1 = arith.constant 0 : index
    %3 = vector.load %arg2[%c0, %c0_1] : memref<16x128xf32, #tpu.memory_space<vmem>>, vector<16x128xf32>
    %4 = vector.shape_cast %3 : vector<16x128xf32> to vector<2x8x128xf32>
    %cst = arith.constant dense<0.000000e+00> : vector<8x128xf32>
    %5 = vector.multi_reduction <add>, %4, %cst [0] : vector<2x8x128xf32> to vector<8x128xf32>
    %c0_2 = arith.constant 0 : index
    %c0_3 = arith.constant 0 : index
    %c0_4 = arith.constant 0 : index
    %6 = vector.load %arg3[%c0_2, %c0_3, %c0_4] : memref<1x8x128xf32, #tpu.memory_space<vmem>>, vector<1x8x128xf32>
    %7 = vector.shape_cast %5 : vector<8x128xf32> to vector<1x8x128xf32>
    %8 = arith.addf %6, %7 : vector<1x8x128xf32>
    %c0_5 = arith.constant 0 : index
    %c0_6 = arith.constant 0 : index
    %c0_7 = arith.constant 0 : index
    %9 = vector.load %arg3[%c0_5, %c0_6, %c0_7] : memref<1x8x128xf32, #tpu.memory_space<vmem>>, vector<1x8x128xf32>
    tpu.vector_store %arg3[%c0_5, %c0_6, %c0_7], %8 {strides = array<i32>} : memref<1x8x128xf32, #tpu.memory_space<vmem>>, vector<1x8x128xf32>,
    return
  }
  func.func @transform_0(%arg0: i32, %arg1: i32) -> (i32, i32) {
    %c1_i32 = arith.constant 1 : i32
    %0 = arith.muli %arg0, %c1_i32 : i32
    %1 = arith.addi %0, %arg1 : i32
    %c0_i32 = arith.constant 0 : i32
    %c0_i32_0 = arith.constant 0 : i32
    return %1, %c0_i32 : i32, i32
  }
  func.func @transform_1(%arg0: i32, %arg1: i32) -> (i32, i32, i32) {
    %c0_i32 = arith.constant 0 : i32
    %c0_i32_0 = arith.constant 0 : i32
    %c0_i32_1 = arith.constant 0 : i32
    return %arg0, %c0_i32, %c0_i32_0 : i32, i32, i32
  }
}

</mosaic_0001>

<llo_original>
// kernel: tpu_custom_call.1
$region0: #{tpu_custom_call.1}
  #allocation0 [shape = 'u32[]', space=smem, size = 0x4, offset = 0x4, fixed_abs, tag = 'smem constant byte address 0x4 - core index']
  #allocation1 [shape = 'u32[144,128]{1,0:T(1,128)}', space=vmem, size = 0x12000, scoped, tag = 'internal scratch']
  %s0 = inlined_call_operand.hbm [shape: f32[16,128], index: 0, kind: input, shape index: {}]
  %s1 = inlined_call_operand.hbm [shape: f32[1,8,128], index: 1, kind: output, shape index: {}]
  %s2 = sld [smem:[#allocation0]]
  $region22: #{tpu_custom_call.1} parent=0
    _
  %s4 = ssub.s32 1, %s2
  %s5 = scalar_select 0, %s4, %s2
  $region1: #{tpu_custom_call.1} parent=0
    #allocation2 [shape = 'u8[8192]{0}', space=vmem, size = 0x2000, scoped, tag = 'input window, operand 0, single buffered']
    #allocation3 [shape = 's32[1]{0}', space=sflag, size = 0x4, scoped, tag = 'scoped memory for tpu_custom_call.1']
    #allocation4 [shape = 's32[1]{0}', space=sflag, size = 0x4, scoped, tag = 'scoped memory for tpu_custom_call.1']
    #allocation5 [shape = 'u8[4096]{0}', space=vmem, size = 0x1000, scoped, tag = 'output window, operand 0, single buffered']
    %6 = vsyncpa [#allocation3], 0
    %7 = vsyncpa [#allocation4], 0
    // Predicated region
    $region2: #{tpu_custom_call.1} parent=1 // pred_check
      _
    $region3: #{tpu_custom_call.1} parent=1 // pred_check_branch
      %9 = sbr.rel (0) target = $region5
    $region4: #{tpu_custom_call.1} parent=1 // pred_region
      %s10 = sadd.s32 0, 0
      %s11 = smul.u32 2, %s10
      %s13 = ssub.s32 256, 256
      %14 = vsyncadd [#allocation3], %s13
      %s15 = smul.addr %s11, 128
      %s16 = scalar_lea.hbm %s0, %s15
      %s17 = sshll.u32 [#allocation2], 4
      %s18 = int_to_ptr.vmem [resolvable:$true] %s17
      %23 = dma.hbm_to_vmem [thread:$0]  %s16, 256, %s18, [#allocation3], 128, 128, 8
    $region5: #{tpu_custom_call.1} parent=1 // pred_fallthru
      _
    // Predicated region
    $region6: #{tpu_custom_call.1} parent=1 // pred_check
      _
    $region7: #{tpu_custom_call.1} parent=1 // pred_check_branch
      %25 = sbr.rel (0) target = $region9
    $region8: #{tpu_custom_call.1} parent=1 // pred_region
      %26 = dma.done [#allocation3], 256
    $region9: #{tpu_custom_call.1} parent=1 // pred_fallthru
      _
    %s27 = sadd.s32 0, 0
    %s28 = smul.u32 2, %s27
    %p29 = scmp.eq.s32.totalorder 0, 0
    // Predicated region
    $region10: #{tpu_custom_call.1} parent=1 // pred_check
      %p30 = pneg %p29
    $region11: #{tpu_custom_call.1} parent=1 // pred_check_branch
      %32 = sbr.rel (%p30) target = $region13
    $region12: #{tpu_custom_call.1} parent=1 // pred_region
      %33 = vst [vmem:[#allocation5] sm:$0xff] 0.0
    $region13: #{tpu_custom_call.1} parent=1 // pred_fallthru
      _
    %v34 = vld [vmem:[#allocation2] sm:$0xff]
    %v35 = vld [vmem:[#allocation2 + $0x8] sm:$0xff]
    %v36 = vadd.f32 %v34, %v35
    %v37 = vld [vmem:[#allocation5] sm:$0xff]
    %v38 = vadd.f32 %v37, %v36
    %39 = vst [vmem:[#allocation5] sm:$0xff] %v38
    // Predicated region
    $region14: #{tpu_custom_call.1} parent=1 // pred_check
      _
    $region15: #{tpu_custom_call.1} parent=1 // pred_check_branch
      %41 = sbr.rel (0) target = $region17
    $region16: #{tpu_custom_call.1} parent=1 // pred_region
      %s43 = ssub.s32 128, 128
      %44 = vsyncadd [#allocation4], %s43
      %s46 = sshll.u32 [#allocation5], 4
      %s47 = int_to_ptr.vmem [resolvable:$true] %s46
      %49 = dma.vmem_to_hbm [thread:$0]  %s47, 128, %s1, [#allocation4]
    $region17: #{tpu_custom_call.1} parent=1 // pred_fallthru
      _
    // Predicated region
    $region18: #{tpu_custom_call.1} parent=1 // pred_check
      _
    $region19: #{tpu_custom_call.1} parent=1 // pred_check_branch
      %51 = sbr.rel (0) target = $region21
    $region20: #{tpu_custom_call.1} parent=1 // pred_region
      %52 = dma.done [#allocation4], 128
    $region21: #{tpu_custom_call.1} parent=1 // pred_fallthru
      _
    %53 = vsyncpa [#allocation3], 1
    %54 = vsyncpa [#allocation4], 1

</llo_original>
